<compile_context>
chip_gen: v5e
topology: v5e:2x2
jax: 0.10.0
libtpu: 0.0.40
codegen_flags: <defaults>
</compile_context>

<pallas_src>
import math

import jax
import jax.numpy as jnp
from jax.experimental import pallas as pl
from jax.experimental.pallas import tpu as pltpu

# ---------------- model hyper-parameters (small, self-consistent) -------------
OUTPUT_DIM = 50       # vocab size
EMBEDDING_DIM = 32
HIDDEN_DIM = 32
N_LAYERS = 2
DROPOUT = 0.1         # identity in eval mode
BATCH = 4
SEQ_LEN = 8           # number of decode steps folded into one pallas_call

OPAD = 128                                  # lane-dense padding of output_dim / vocab
XIN = max(EMBEDDING_DIM, HIDDEN_DIM)        # width of the "x" slot in the fused weight
INW = XIN + HIDDEN_DIM                      # fused matmul contraction dim (== 64 here)


# ------------------------------- Pallas kernel --------------------------------
def _decoder_seq_kernel(
    tok_ref,      # [1, B, 1]        int32 token ids for this step
    h0_ref,       # [L, B, H]        initial hidden state     (resident)
    c0_ref,       # [L, B, H]        initial cell state       (resident)
    emb_ref,      # [OPAD, E]        zero-padded embedding    (resident)
    w_ref,        # [L, XIN+H, 4H]   fused (W_ih ; W_hh)^T, gate order (i,f,o,g)
    b_ref,        # [L, 1, 4H]       combined bias b_ih+b_hh, gate order (i,f,o,g)
    fcw_ref,      # [H, OPAD]        fc_out weight^T, padded  (resident)
    fcb_ref,      # [1, OPAD]        fc_out bias, padded      (resident)
    pred_ref,     # [1, B, OPAD]     output: logits for this step
    hout_ref,     # [L, B, H]        output: running hidden state (VMEM-resident)
    cout_ref,     # [L, B, H]        output: running cell state   (VMEM-resident)
):
    t = pl.program_id(0)
    n_layers, B, H = h0_ref.shape
    opad = emb_ref.shape[0]
    xin = w_ref.shape[1] - H

    # Load the initial recurrent state into the resident output blocks once.
    @pl.when(t == 0)
    def _():
        hout_ref[...] = h0_ref[...]
        cout_ref[...] = c0_ref[...]

    # ---- embedding lookup as a one-hot matmul (gather-free, MXU-friendly) ----
    tok = tok_ref[0]                                                  # [B, 1] int32
    vocab_lane = jax.lax.broadcasted_iota(jnp.int32, (B, opad), 1)
    onehot = (vocab_lane == tok).astype(jnp.float32)                  # [B, OPAD]
    x = jnp.dot(onehot, emb_ref[...], preferred_element_type=jnp.float32)  # [B, E]
    # TODO(synk): nn.Dropout on the embedding is identity in eval mode; training-mode
    # dropout would need pltpu.prng_seed / prng_random_bits here.

    layer_in = x
    for l in range(n_layers):
        h_prev = hout_ref[l]                                          # [B, H]
        c_prev = cout_ref[l]                                          # [B, H]
        if layer_in.shape[1] < xin:                                   # static; no-op when E == H
            layer_in = jnp.pad(layer_in, ((0, 0), (0, xin - layer_in.shape[1])))
        xh = jnp.concatenate([layer_in, h_prev], axis=-1)             # [B, XIN+H]

        # single fused gate matmul: [B, 64] @ [64, 128] (+ combined bias)
        gates = (
            jnp.dot(xh, w_ref[l], preferred_element_type=jnp.float32) + b_ref[l]
        )                                                             # [B, 4H] (i,f,o,g)

        ifo = jax.nn.sigmoid(gates[:, :3 * H])                        # one contiguous sigmoid
        g_g = jnp.tanh(gates[:, 3 * H:])                              # one contiguous tanh
        i_g = ifo[:, 0 * H:1 * H]
        f_g = ifo[:, 1 * H:2 * H]
        o_g = ifo[:, 2 * H:3 * H]

        c_new = f_g * c_prev + i_g * g_g
        h_new = o_g * jnp.tanh(c_new)

        hout_ref[l] = h_new
        cout_ref[l] = c_new
        # TODO(synk): inter-layer LSTM dropout only applies in training mode; eval = identity.
        layer_in = h_new

    pred_ref[0] = (
        jnp.dot(layer_in, fcw_ref[...], preferred_element_type=jnp.float32)
        + fcb_ref[...]
    )


# --------------------------------- wrapper -------------------------------------
def decoder_forward(params, input_ids, hidden, cell):
    """Decoder over a sequence of token ids inside ONE pallas_call.

    input_ids: [T, B] int32 (or [B] for a single step == original Decoder.forward)
    hidden, cell: [L, B, H]
    returns (predictions [T, B, O] (or [B, O]), hidden [L, B, H], cell [L, B, H])
    """
    squeeze = input_ids.ndim == 1
    if squeeze:
        input_ids = input_ids[None, :]
    T, B = input_ids.shape
    L, _, H = hidden.shape

    tokens = input_ids.astype(jnp.int32)[..., None]                   # [T, B, 1]

    def resident(shape):
        return pl.BlockSpec(shape, lambda t: (0,) * len(shape))

    flops = T * (2 * B * OPAD * EMBEDDING_DIM
                 + L * 2 * B * INW * 4 * H
                 + 2 * B * H * OPAD)
    transcendentals = T * L * B * (4 * H + H)
    param_bytes = 4 * (OPAD * EMBEDDING_DIM + L * INW * 4 * H
                       + L * 4 * H + H * OPAD + OPAD)
    bytes_accessed = param_bytes + 4 * T * B * (1 + OPAD) + 4 * 4 * L * B * H

    preds, h_new, c_new = pl.pallas_call(
        _decoder_seq_kernel,
        grid=(T,),
        in_specs=[
            pl.BlockSpec((1, B, 1), lambda t: (t, 0, 0)),     # per-step token ids
            resident((L, B, H)),                              # h0
            resident((L, B, H)),                              # c0
            resident((OPAD, EMBEDDING_DIM)),                  # embedding table (padded)
            resident((L, INW, 4 * H)),                        # fused LSTM weights
            resident((L, 1, 4 * H)),                          # fused LSTM bias
            resident((H, OPAD)),                              # fc_out weight^T (padded)
            resident((1, OPAD)),                              # fc_out bias (padded)
        ],
        out_specs=(
            pl.BlockSpec((1, B, OPAD), lambda t: (t, 0, 0)),  # lane-dense per-step logits
            resident((L, B, H)),                              # final hidden (written at end)
            resident((L, B, H)),                              # final cell
        ),
        out_shape=(
            jax.ShapeDtypeStruct((T, B, OPAD), jnp.float32),
            jax.ShapeDtypeStruct((L, B, H), jnp.float32),
            jax.ShapeDtypeStruct((L, B, H), jnp.float32),
        ),
        compiler_params=pltpu.CompilerParams(
            dimension_semantics=("arbitrary",)),
        cost_estimate=pl.CostEstimate(
            flops=flops,
            transcendentals=transcendentals,
            bytes_accessed=bytes_accessed),
    )(tokens, hidden, cell, params["emb_pad"], params["w_pack"],
      params["b_pack"], params["fcw_pad"], params["fcb_pad"])

    preds = preds[..., :OUTPUT_DIM]
    if squeeze:
        preds = preds[0]
    return preds, h_new, c_new


# --------------------------- deterministic parameters --------------------------
def _reorder_ifog_to_ifog_ofg(m, H):
    """Rows of m are in PyTorch gate order (i, f, g, o); return (i, f, o, g)."""
    return jnp.concatenate([m[:2 * H], m[3 * H:4 * H], m[2 * H:3 * H]], axis=0)


def init_params(key):
    ks = jax.random.split(key, 4 + 4 * N_LAYERS)
    bound = 1.0 / math.sqrt(HIDDEN_DIM)
    H = HIDDEN_DIM

    def u(kk, shape):
        return jax.random.uniform(kk, shape, jnp.float32, -bound, bound)

    # embedding ~ N(0, 1) like nn.Embedding default
    embedding = jax.random.normal(ks[0], (OUTPUT_DIM, EMBEDDING_DIM), jnp.float32)
    emb_pad = jnp.zeros((OPAD, EMBEDDING_DIM), jnp.float32).at[:OUTPUT_DIM].set(embedding)

    lstm_raw = []   # PyTorch-ordered raw weights, used by the pure-JAX reference
    w_pack = jnp.zeros((N_LAYERS, INW, 4 * H), jnp.float32)
    b_pack = jnp.zeros((N_LAYERS, 1, 4 * H), jnp.float32)
    for l in range(N_LAYERS):
        in_dim = EMBEDDING_DIM if l == 0 else H
        w_ih = u(ks[4 + 4 * l + 0], (4 * H, in_dim))     # rows: (i, f, g, o)
        w_hh = u(ks[4 + 4 * l + 1], (4 * H, H))
        b_ih = u(ks[4 + 4 * l + 2], (4 * H,))
        b_hh = u(ks[4 + 4 * l + 3], (4 * H,))
        lstm_raw.append((w_ih, w_hh, b_ih, b_hh))

        w_ih_r = _reorder_ifog_to_ifog_ofg(w_ih, H)      # rows: (i, f, o, g)
        w_hh_r = _reorder_ifog_to_ifog_ofg(w_hh, H)
        b_r = _reorder_ifog_to_ifog_ofg((b_ih + b_hh)[:, None], H)[:, 0]
        w_pack = w_pack.at[l, :in_dim, :].set(w_ih_r.T)
        w_pack = w_pack.at[l, XIN:XIN + H, :].set(w_hh_r.T)
        b_pack = b_pack.at[l, 0, :].set(b_r)

    fc_w = u(ks[1], (OUTPUT_DIM, HIDDEN_DIM))
    fc_b = u(ks[2], (OUTPUT_DIM,))
    fcw_pad = jnp.zeros((HIDDEN_DIM, OPAD), jnp.float32).at[:, :OUTPUT_DIM].set(fc_w.T)
    fcb_pad = jnp.zeros((1, OPAD), jnp.float32).at[0, :OUTPUT_DIM].set(fc_b)

    # TODO(synk): bf16 weights/activations would better feed the MXU on v6e/v7x but
    # loosen the f32 reference tolerance; kept f32 here for exact-ish parity.
    return {
        "embedding": embedding,
        "emb_pad": emb_pad,
        "lstm_raw": lstm_raw,
        "w_pack": w_pack,
        "b_pack": b_pack,
        "fc_w": fc_w,
        "fc_b": fc_b,
        "fcw_pad": fcw_pad,
        "fcb_pad": fcb_pad,
    }


# ------------------------------ pure-JAX reference ------------------------------
def reference_step(params, input_ids, hidden, cell):
    H = HIDDEN_DIM
    x = jnp.take(params["embedding"], input_ids, axis=0)             # [B, E]
    h_out, c_out = [], []
    layer_in = x
    for l in range(N_LAYERS):
        w_ih, w_hh, b_ih, b_hh = params["lstm_raw"][l]
        gates = layer_in @ w_ih.T + hidden[l] @ w_hh.T + b_ih + b_hh  # (i, f, g, o)
        i_g = jax.nn.sigmoid(gates[:, 0 * H:1 * H])
        f_g = jax.nn.sigmoid(gates[:, 1 * H:2 * H])
        g_g = jnp.tanh(gates[:, 2 * H:3 * H])
        o_g = jax.nn.sigmoid(gates[:, 3 * H:4 * H])
        c_new = f_g * cell[l] + i_g * g_g
        h_new = o_g * jnp.tanh(c_new)
        h_out.append(h_new)
        c_out.append(c_new)
        layer_in = h_new
    pred = layer_in @ params["fc_w"].T + params["fc_b"]
    return pred, jnp.stack(h_out), jnp.stack(c_out)


def reference_seq(params, token_seq, hidden, cell):
    preds = []
    for t in range(token_seq.shape[0]):
        p, hidden, cell = reference_step(params, token_seq[t], hidden, cell)
        preds.append(p)
    return jnp.stack(preds), hidden, cell


# ------------------------------------ main --------------------------------------
if __name__ == "__main__":
    key = jax.random.PRNGKey(0)
    pkey, ikey, hkey, ckey = jax.random.split(key, 4)

    params = init_params(pkey)
    token_seq = jax.random.randint(ikey, (SEQ_LEN, BATCH), 0, OUTPUT_DIM, jnp.int32)
    hidden = jax.random.normal(hkey, (N_LAYERS, BATCH, HIDDEN_DIM), jnp.float32)
    cell = jax.random.normal(ckey, (N_LAYERS, BATCH, HIDDEN_DIM), jnp.float32)

    run = jax.jit(decoder_forward)

    # multi-step decode: whole time loop in one pallas_call
    preds, h_new, c_new = run(params, token_seq, hidden, cell)
    jax.block_until_ready((preds, h_new, c_new))

    preds_r, h_r, c_r = reference_seq(params, token_seq, hidden, cell)
    assert jnp.allclose(preds, preds_r, atol=1e-4), "sequence prediction mismatch"
    assert jnp.allclose(h_new, h_r, atol=1e-4), "sequence hidden mismatch"
    assert jnp.allclose(c_new, c_r, atol=1e-4), "sequence cell mismatch"

    # single-step call: exactly the original Decoder.forward signature/semantics
    p1, h1, c1 = run(params, token_seq[0], hidden, cell)
    jax.block_until_ready((p1, h1, c1))
    p1_r, h1_r, c1_r = reference_step(params, token_seq[0], hidden, cell)
    assert jnp.allclose(p1, p1_r, atol=1e-4), "single-step prediction mismatch"
    assert jnp.allclose(h1, h1_r, atol=1e-4), "single-step hidden mismatch"
    assert jnp.allclose(c1, c1_r, atol=1e-4), "single-step cell mismatch"

    print("KERNEL_OK")
</pallas_src>

<mosaic_0001>
module attributes {stable_mosaic.version = 11 : i64} {
  func.func @_decoder_seq_kernel(%arg0: i32, %arg1: memref<1x4x1xi32, #tpu.memory_space<vmem>>, %arg2: memref<2x4x32xf32, #tpu.memory_space<vmem>>, %arg3: memref<2x4x32xf32, #tpu.memory_space<vmem>>, %arg4: memref<128x32xf32, #tpu.memory_space<vmem>>, %arg5: memref<2x64x128xf32, #tpu.memory_space<vmem>>, %arg6: memref<2x1x128xf32, #tpu.memory_space<vmem>>, %arg7: memref<32x128xf32, #tpu.memory_space<vmem>>, %arg8: memref<1x128xf32, #tpu.memory_space<vmem>>, %arg9: memref<1x4x128xf32, #tpu.memory_space<vmem>>, %arg10: memref<2x4x32xf32, #tpu.memory_space<vmem>>, %arg11: memref<2x4x32xf32, #tpu.memory_space<vmem>>) attributes {dimension_semantics = [#tpu.dimension_semantics<arbitrary>], iteration_bounds = array<i64: 8>, scalar_prefetch = 0 : i64, scratch_operands = 0 : i64, tpu.core_type = #tpu.core_type<tc>, window_params = [{transform_indices = @transform_0, window_bounds = array<i64: 1, 4, 1>}, {pipeline_mode = #tpu.pipeline_mode<synchronous>, transform_indices = @transform_1, window_bounds = array<i64: 2, 4, 32>}, {pipeline_mode = #tpu.pipeline_mode<synchronous>, transform_indices = @transform_2, window_bounds = array<i64: 2, 4, 32>}, {pipeline_mode = #tpu.pipeline_mode<synchronous>, transform_indices = @transform_3, window_bounds = array<i64: 128, 32>}, {pipeline_mode = #tpu.pipeline_mode<synchronous>, transform_indices = @transform_4, window_bounds = array<i64: 2, 64, 128>}, {pipeline_mode = #tpu.pipeline_mode<synchronous>, transform_indices = @transform_5, window_bounds = array<i64: 2, 1, 128>}, {pipeline_mode = #tpu.pipeline_mode<synchronous>, transform_indices = @transform_6, window_bounds = array<i64: 32, 128>}, {pipeline_mode = #tpu.pipeline_mode<synchronous>, transform_indices = @transform_7, window_bounds = array<i64: 1, 128>}, {transform_indices = @transform_8, window_bounds = array<i64: 1, 4, 128>}, {pipeline_mode = #tpu.pipeline_mode<synchronous>, transform_indices = @transform_9, window_bounds = array<i64: 2, 4, 32>}, {pipeline_mode = #tpu.pipeline_mode<synchronous>, transform_indices = @transform_10, window_bounds = array<i64: 2, 4, 32>}]} {
    %c0_i32 = arith.constant 0 : i32
    %0 = arith.cmpi eq, %arg0, %c0_i32 : i32
    %1 = arith.extui %0 : i1 to i32
    %c0_i32_0 = arith.constant 0 : i32
    %2 = arith.cmpi ne, %1, %c0_i32_0 : i32
    scf.if %2 {
      %c0_52 = arith.constant 0 : index
      %c0_53 = arith.constant 0 : index
      %c0_54 = arith.constant 0 : index
      %88 = vector.load %arg2[%c0_52, %c0_53, %c0_54] : memref<2x4x32xf32, #tpu.memory_space<vmem>>, vector<2x4x32xf32>
      %c0_55 = arith.constant 0 : index
      %c0_56 = arith.constant 0 : index
      %c0_57 = arith.constant 0 : index
      %89 = vector.load %arg10[%c0_55, %c0_56, %c0_57] : memref<2x4x32xf32, #tpu.memory_space<vmem>>, vector<2x4x32xf32>
      tpu.vector_store %arg10[%c0_55, %c0_56, %c0_57], %88 {strides = array<i32>} : memref<2x4x32xf32, #tpu.memory_space<vmem>>, vector<2x4x32xf32>,
      %c0_58 = arith.constant 0 : index
      %c0_59 = arith.constant 0 : index
      %c0_60 = arith.constant 0 : index
      %90 = vector.load %arg3[%c0_58, %c0_59, %c0_60] : memref<2x4x32xf32, #tpu.memory_space<vmem>>, vector<2x4x32xf32>
      %c0_61 = arith.constant 0 : index
      %c0_62 = arith.constant 0 : index
      %c0_63 = arith.constant 0 : index
      %91 = vector.load %arg11[%c0_61, %c0_62, %c0_63] : memref<2x4x32xf32, #tpu.memory_space<vmem>>, vector<2x4x32xf32>
      tpu.vector_store %arg11[%c0_61, %c0_62, %c0_63], %90 {strides = array<i32>} : memref<2x4x32xf32, #tpu.memory_space<vmem>>, vector<2x4x32xf32>,
    } else {
    }
    %c0 = arith.constant 0 : index
    %c0_1 = arith.constant 0 : index
    %c0_2 = arith.constant 0 : index
    %3 = vector.load %arg1[%c0, %c0_1, %c0_2] : memref<1x4x1xi32, #tpu.memory_space<vmem>>, vector<1x4x1xi32>
    %4 = vector.shape_cast %3 : vector<1x4x1xi32> to vector<4x1xi32>
    %5 = tpu.iota {dimensions = array<i32: 1>} : vector<4x128xi32>
    %6 = vector.broadcast %4 : vector<4x1xi32> to vector<4x128xi32>
    %7 = arith.cmpi eq, %5, %6 : vector<4x128xi32>
    %8 = arith.extui %7 : vector<4x128xi1> to vector<4x128xi32>
    %9 = arith.sitofp %8 : vector<4x128xi32> to vector<4x128xf32>
    %c0_3 = arith.constant 0 : index
    %c0_4 = arith.constant 0 : index
    %10 = vector.load %arg4[%c0_3, %c0_4] : memref<128x32xf32, #tpu.memory_space<vmem>>, vector<128x32xf32>
    %cst = arith.constant dense<0.000000e+00> : vector<4x32xf32>
    %11 = tpu.matmul %9, %10, %cst {dimension_numbers = #tpu.dot_dimension_numbers<[1], [0], [0], [1], [0, 0, 1, 1], [], []>} : vector<4x128xf32>, vector<128x32xf32>, vector<4x32xf32> -> vector<4x32xf32>
    %c0_5 = arith.constant 0 : index
    %c0_6 = arith.constant 0 : index
    %c0_7 = arith.constant 0 : index
    %12 = vector.load %arg10[%c0_5, %c0_6, %c0_7] : memref<2x4x32xf32, #tpu.memory_space<vmem>>, vector<1x4x32xf32>
    %13 = vector.shape_cast %12 : vector<1x4x32xf32> to vector<4x32xf32>
    %c0_8 = arith.constant 0 : index
    %c0_9 = arith.constant 0 : index
    %c0_10 = arith.constant 0 : index
    %14 = vector.load %arg11[%c0_8, %c0_9, %c0_10] : memref<2x4x32xf32, #tpu.memory_space<vmem>>, vector<1x4x32xf32>
    %15 = vector.shape_cast %14 : vector<1x4x32xf32> to vector<4x32xf32>
    %16 = tpu.concatenate %11, %13 in 1 : vector<4x32xf32>, vector<4x32xf32> -> vector<4x64xf32>
    %c0_11 = arith.constant 0 : index
    %c0_12 = arith.constant 0 : index
    %c0_13 = arith.constant 0 : index
    %17 = vector.load %arg5[%c0_11, %c0_12, %c0_13] : memref<2x64x128xf32, #tpu.memory_space<vmem>>, vector<1x64x128xf32>
    %18 = vector.shape_cast %17 : vector<1x64x128xf32> to vector<64x128xf32>
    %cst_14 = arith.constant dense<0.000000e+00> : vector<4x128xf32>
    %19 = tpu.matmul %16, %18, %cst_14 {dimension_numbers = #tpu.dot_dimension_numbers<[1], [0], [0], [1], [0, 0, 1, 1], [], []>} : vector<4x64xf32>, vector<64x128xf32>, vector<4x128xf32> -> vector<4x128xf32>
    %c0_15 = arith.constant 0 : index
    %c0_16 = arith.constant 0 : index
    %c0_17 = arith.constant 0 : index
    %20 = vector.load %arg6[%c0_15, %c0_16, %c0_17] : memref<2x1x128xf32, #tpu.memory_space<vmem>>, vector<1x1x128xf32>
    %21 = vector.shape_cast %20 : vector<1x1x128xf32> to vector<1x128xf32>
    %22 = vector.broadcast %21 : vector<1x128xf32> to vector<4x128xf32>
    %23 = arith.addf %19, %22 : vector<4x128xf32>
    %24 = vector.extract_strided_slice %23 {offsets = [0, 0], sizes = [4, 96], strides = [1, 1]} : vector<4x128xf32> to vector<4x96xf32>
    %25 = arith.negf %24 : vector<4x96xf32>
    %26 = math.exp %25 : vector<4x96xf32>
    %cst_18 = arith.constant 1.000000e+00 : f32
    %27 = vector.broadcast %cst_18 : f32 to vector<4x96xf32>
    %28 = arith.addf %27, %26 : vector<4x96xf32>
    %29 = arith.divf %27, %28 : vector<4x96xf32>
    %30 = vector.extract_strided_slice %23 {offsets = [0, 96], sizes = [4, 32], strides = [1, 1]} : vector<4x128xf32> to vector<4x32xf32>
    %31 = math.tanh %30 : vector<4x32xf32>
    %32 = vector.extract_strided_slice %29 {offsets = [0, 0], sizes = [4, 32], strides = [1, 1]} : vector<4x96xf32> to vector<4x32xf32>
    %33 = vector.extract_strided_slice %29 {offsets = [0, 32], sizes = [4, 32], strides = [1, 1]} : vector<4x96xf32> to vector<4x32xf32>
    %34 = vector.extract_strided_slice %29 {offsets = [0, 64], sizes = [4, 32], strides = [1, 1]} : vector<4x96xf32> to vector<4x32xf32>
    %35 = arith.mulf %33, %15 : vector<4x32xf32>
    %36 = arith.mulf %32, %31 : vector<4x32xf32>
    %37 = arith.addf %35, %36 : vector<4x32xf32>
    %38 = math.tanh %37 : vector<4x32xf32>
    %39 = arith.mulf %34, %38 : vector<4x32xf32>
    %c0_19 = arith.constant 0 : index
    %c0_20 = arith.constant 0 : index
    %c0_21 = arith.constant 0 : index
    %40 = vector.load %arg10[%c0_19, %c0_20, %c0_21] : memref<2x4x32xf32, #tpu.memory_space<vmem>>, vector<1x4x32xf32>
    %41 = vector.shape_cast %40 : vector<1x4x32xf32> to vector<4x32xf32>
    %42 = vector.shape_cast %39 : vector<4x32xf32> to vector<1x4x32xf32>
    tpu.vector_store %arg10[%c0_19, %c0_20, %c0_21], %42 {strides = array<i32>} : memref<2x4x32xf32, #tpu.memory_space<vmem>>, vector<1x4x32xf32>,
    %c0_22 = arith.constant 0 : index
    %c0_23 = arith.constant 0 : index
    %c0_24 = arith.constant 0 : index
    %43 = vector.load %arg11[%c0_22, %c0_23, %c0_24] : memref<2x4x32xf32, #tpu.memory_space<vmem>>, vector<1x4x32xf32>
    %44 = vector.shape_cast %43 : vector<1x4x32xf32> to vector<4x32xf32>
    %45 = vector.shape_cast %37 : vector<4x32xf32> to vector<1x4x32xf32>
    tpu.vector_store %arg11[%c0_22, %c0_23, %c0_24], %45 {strides = array<i32>} : memref<2x4x32xf32, #tpu.memory_space<vmem>>, vector<1x4x32xf32>,
    %c1 = arith.constant 1 : index
    %c0_25 = arith.constant 0 : index
    %c0_26 = arith.constant 0 : index
    %46 = vector.load %arg10[%c1, %c0_25, %c0_26] : memref<2x4x32xf32, #tpu.memory_space<vmem>>, vector<1x4x32xf32>
    %47 = vector.shape_cast %46 : vector<1x4x32xf32> to vector<4x32xf32>
    %c1_27 = arith.constant 1 : index
    %c0_28 = arith.constant 0 : index
    %c0_29 = arith.constant 0 : index
    %48 = vector.load %arg11[%c1_27, %c0_28, %c0_29] : memref<2x4x32xf32, #tpu.memory_space<vmem>>, vector<1x4x32xf32>
    %49 = vector.shape_cast %48 : vector<1x4x32xf32> to vector<4x32xf32>
    %50 = tpu.concatenate %39, %47 in 1 : vector<4x32xf32>, vector<4x32xf32> -> vector<4x64xf32>
    %c1_30 = arith.constant 1 : index
    %c0_31 = arith.constant 0 : index
    %c0_32 = arith.constant 0 : index
    %51 = vector.load %arg5[%c1_30, %c0_31, %c0_32] : memref<2x64x128xf32, #tpu.memory_space<vmem>>, vector<1x64x128xf32>
    %52 = vector.shape_cast %51 : vector<1x64x128xf32> to vector<64x128xf32>
    %cst_33 = arith.constant dense<0.000000e+00> : vector<4x128xf32>
    %53 = tpu.matmul %50, %52, %cst_33 {dimension_numbers = #tpu.dot_dimension_numbers<[1], [0], [0], [1], [0, 0, 1, 1], [], []>} : vector<4x64xf32>, vector<64x128xf32>, vector<4x128xf32> -> vector<4x128xf32>
    %c1_34 = arith.constant 1 : index
    %c0_35 = arith.constant 0 : index
    %c0_36 = arith.constant 0 : index
    %54 = vector.load %arg6[%c1_34, %c0_35, %c0_36] : memref<2x1x128xf32, #tpu.memory_space<vmem>>, vector<1x1x128xf32>
    %55 = vector.shape_cast %54 : vector<1x1x128xf32> to vector<1x128xf32>
    %56 = vector.broadcast %55 : vector<1x128xf32> to vector<4x128xf32>
    %57 = arith.addf %53, %56 : vector<4x128xf32>
    %58 = vector.extract_strided_slice %57 {offsets = [0, 0], sizes = [4, 96], strides = [1, 1]} : vector<4x128xf32> to vector<4x96xf32>
    %59 = arith.negf %58 : vector<4x96xf32>
    %60 = math.exp %59 : vector<4x96xf32>
    %cst_37 = arith.constant 1.000000e+00 : f32
    %61 = vector.broadcast %cst_37 : f32 to vector<4x96xf32>
    %62 = arith.addf %61, %60 : vector<4x96xf32>
    %63 = arith.divf %61, %62 : vector<4x96xf32>
    %64 = vector.extract_strided_slice %57 {offsets = [0, 96], sizes = [4, 32], strides = [1, 1]} : vector<4x128xf32> to vector<4x32xf32>
    %65 = math.tanh %64 : vector<4x32xf32>
    %66 = vector.extract_strided_slice %63 {offsets = [0, 0], sizes = [4, 32], strides = [1, 1]} : vector<4x96xf32> to vector<4x32xf32>
    %67 = vector.extract_strided_slice %63 {offsets = [0, 32], sizes = [4, 32], strides = [1, 1]} : vector<4x96xf32> to vector<4x32xf32>
    %68 = vector.extract_strided_slice %63 {offsets = [0, 64], sizes = [4, 32], strides = [1, 1]} : vector<4x96xf32> to vector<4x32xf32>
    %69 = arith.mulf %67, %49 : vector<4x32xf32>
    %70 = arith.mulf %66, %65 : vector<4x32xf32>
    %71 = arith.addf %69, %70 : vector<4x32xf32>
    %72 = math.tanh %71 : vector<4x32xf32>
    %73 = arith.mulf %68, %72 : vector<4x32xf32>
    %c1_38 = arith.constant 1 : index
    %c0_39 = arith.constant 0 : index
    %c0_40 = arith.constant 0 : index
    %74 = vector.load %arg10[%c1_38, %c0_39, %c0_40] : memref<2x4x32xf32, #tpu.memory_space<vmem>>, vector<1x4x32xf32>
    %75 = vector.shape_cast %74 : vector<1x4x32xf32> to vector<4x32xf32>
    %76 = vector.shape_cast %73 : vector<4x32xf32> to vector<1x4x32xf32>
    tpu.vector_store %arg10[%c1_38, %c0_39, %c0_40], %76 {strides = array<i32>} : memref<2x4x32xf32, #tpu.memory_space<vmem>>, vector<1x4x32xf32>,
    %c1_41 = arith.constant 1 : index
    %c0_42 = arith.constant 0 : index
    %c0_43 = arith.constant 0 : index
    %77 = vector.load %arg11[%c1_41, %c0_42, %c0_43] : memref<2x4x32xf32, #tpu.memory_space<vmem>>, vector<1x4x32xf32>
    %78 = vector.shape_cast %77 : vector<1x4x32xf32> to vector<4x32xf32>
    %79 = vector.shape_cast %71 : vector<4x32xf32> to vector<1x4x32xf32>
    tpu.vector_store %arg11[%c1_41, %c0_42, %c0_43], %79 {strides = array<i32>} : memref<2x4x32xf32, #tpu.memory_space<vmem>>, vector<1x4x32xf32>,
    %c0_44 = arith.constant 0 : index
    %c0_45 = arith.constant 0 : index
    %80 = vector.load %arg7[%c0_44, %c0_45] : memref<32x128xf32, #tpu.memory_space<vmem>>, vector<32x128xf32>
    %cst_46 = arith.constant dense<0.000000e+00> : vector<4x128xf32>
    %81 = tpu.matmul %73, %80, %cst_46 {dimension_numbers = #tpu.dot_dimension_numbers<[1], [0], [0], [1], [0, 0, 1, 1], [], []>} : vector<4x32xf32>, vector<32x128xf32>, vector<4x128xf32> -> vector<4x128xf32>
    %c0_47 = arith.constant 0 : index
    %c0_48 = arith.constant 0 : index
    %82 = vector.load %arg8[%c0_47, %c0_48] : memref<1x128xf32, #tpu.memory_space<vmem>>, vector<1x128xf32>
    %83 = vector.broadcast %82 : vector<1x128xf32> to vector<4x128xf32>
    %84 = arith.addf %81, %83 : vector<4x128xf32>
    %c0_49 = arith.constant 0 : index
    %c0_50 = arith.constant 0 : index
    %c0_51 = arith.constant 0 : index
    %85 = vector.load %arg9[%c0_49, %c0_50, %c0_51] : memref<1x4x128xf32, #tpu.memory_space<vmem>>, vector<1x4x128xf32>
    %86 = vector.shape_cast %85 : vector<1x4x128xf32> to vector<4x128xf32>
    %87 = vector.shape_cast %84 : vector<4x128xf32> to vector<1x4x128xf32>
    tpu.vector_store %arg9[%c0_49, %c0_50, %c0_51], %87 {strides = array<i32>} : memref<1x4x128xf32, #tpu.memory_space<vmem>>, vector<1x4x128xf32>,
    return
  }
  func.func @transform_0(%arg0: i32) -> (i32, i32, i32) {
    %c0_i32 = arith.constant 0 : i32
    %c0_i32_0 = arith.constant 0 : i32
    %c0_i32_1 = arith.constant 0 : i32
    return %arg0, %c0_i32, %c0_i32_0 : i32, i32, i32
  }
  func.func @transform_1(%arg0: i32) -> (i32, i32, i32) {
    %c0_i32 = arith.constant 0 : i32
    %c0_i32_0 = arith.constant 0 : i32
    %c0_i32_1 = arith.constant 0 : i32
    %c0_i32_2 = arith.constant 0 : i32
    return %c0_i32, %c0_i32_0, %c0_i32_1 : i32, i32, i32
  }
  func.func @transform_2(%arg0: i32) -> (i32, i32, i32) {
    %c0_i32 = arith.constant 0 : i32
    %c0_i32_0 = arith.constant 0 : i32
    %c0_i32_1 = arith.constant 0 : i32
    %c0_i32_2 = arith.constant 0 : i32
    return %c0_i32, %c0_i32_0, %c0_i32_1 : i32, i32, i32
  }
  func.func @transform_3(%arg0: i32) -> (i32, i32) {
    %c0_i32 = arith.constant 0 : i32
    %c0_i32_0 = arith.constant 0 : i32
    %c0_i32_1 = arith.constant 0 : i32
    return %c0_i32, %c0_i32_0 : i32, i32
  }
  func.func @transform_4(%arg0: i32) -> (i32, i32, i32) {
    %c0_i32 = arith.constant 0 : i32
    %c0_i32_0 = arith.constant 0 : i32
    %c0_i32_1 = arith.constant 0 : i32
    %c0_i32_2 = arith.constant 0 : i32
    return %c0_i32, %c0_i32_0, %c0_i32_1 : i32, i32, i32
  }
  func.func @transform_5(%arg0: i32) -> (i32, i32, i32) {
    %c0_i32 = arith.constant 0 : i32
    %c0_i32_0 = arith.constant 0 : i32
    %c0_i32_1 = arith.constant 0 : i32
    %c0_i32_2 = arith.constant 0 : i32
    return %c0_i32, %c0_i32_0, %c0_i32_1 : i32, i32, i32
  }
  func.func @transform_6(%arg0: i32) -> (i32, i32) {
    %c0_i32 = arith.constant 0 : i32
    %c0_i32_0 = arith.constant 0 : i32
    %c0_i32_1 = arith.constant 0 : i32
    return %c0_i32, %c0_i32_0 : i32, i32
  }
  func.func @transform_7(%arg0: i32) -> (i32, i32) {
    %c0_i32 = arith.constant 0 : i32
    %c0_i32_0 = arith.constant 0 : i32
    %c0_i32_1 = arith.constant 0 : i32
    return %c0_i32, %c0_i32_0 : i32, i32
  }
  func.func @transform_8(%arg0: i32) -> (i32, i32, i32) {
    %c0_i32 = arith.constant 0 : i32
    %c0_i32_0 = arith.constant 0 : i32
    %c0_i32_1 = arith.constant 0 : i32
    return %arg0, %c0_i32, %c0_i32_0 : i32, i32, i32
  }
  func.func @transform_9(%arg0: i32) -> (i32, i32, i32) {
    %c0_i32 = arith.constant 0 : i32
    %c0_i32_0 = arith.constant 0 : i32
    %c0_i32_1 = arith.constant 0 : i32
    %c0_i32_2 = arith.constant 0 : i32
    return %c0_i32, %c0_i32_0, %c0_i32_1 : i32, i32, i32
  }
  func.func @transform_10(%arg0: i32) -> (i32, i32, i32) {
    %c0_i32 = arith.constant 0 : i32
    %c0_i32_0 = arith.constant 0 : i32
    %c0_i32_1 = arith.constant 0 : i32
    %c0_i32_2 = arith.constant 0 : i32
    return %c0_i32, %c0_i32_0, %c0_i32_1 : i32, i32, i32
  }
}

</mosaic_0001>

<llo_original>
// kernel: decoder_forward.1
$region0: #{decoder_forward.1}
  #allocation0 [shape = 'u32[]', space=smem, size = 0x4, offset = 0x4, fixed_abs, tag = 'smem constant byte address 0x4 - core index']
  #allocation1 [shape = 'u32[72,128]{1,0:T(1,128)}', space=vmem, size = 0x9000, scoped, tag = 'internal scratch']
  %s0 = inlined_call_operand.vmem [shape: s32[8,4,1], index: 0, kind: input, shape index: {}]
  %s1 = inlined_call_operand.vmem [shape: f32[2,4,32], index: 1, kind: input, shape index: {}]
  %s2 = inlined_call_operand.vmem [shape: f32[2,4,32], index: 2, kind: input, shape index: {}]
  %s3 = inlined_call_operand.vmem [shape: f32[128,32], index: 3, kind: input, shape index: {}]
  %s4 = inlined_call_operand.vmem [shape: f32[2,64,128], index: 4, kind: input, shape index: {}]
  %s5 = inlined_call_operand.vmem [shape: f32[2,1,128], index: 5, kind: input, shape index: {}]
  %s6 = inlined_call_operand.vmem [shape: f32[32,128], index: 6, kind: input, shape index: {}]
  %s7 = inlined_call_operand.vmem [shape: f32[1,128], index: 7, kind: input, shape index: {}]
  %s8 = inlined_call_operand.hbm [shape: f32[8,4,128], index: 8, kind: output, shape index: {0}]
  %s9 = inlined_call_operand.hbm [shape: f32[2,4,32], index: 9, kind: output, shape index: {1}]
  %s10 = inlined_call_operand.hbm [shape: f32[2,4,32], index: 10, kind: output, shape index: {2}]
  %11 = xla_tuple %s8, %s9, %s10
  %s12 = sld [smem:[#allocation0]]
  $region85: #{decoder_forward.1} parent=0
    _
  %s14 = ssub.s32 1, %s12
  %s15 = scalar_select 0, %s14, %s12
  $region1: #{decoder_forward.1} parent=0
    #allocation2 [shape = 'u8[4096]{0}', space=vmem, size = 0x1000, scoped, tag = 'output window, operand 0']
    #allocation3 [shape = 's32[2]{0}', space=sflag, size = 0x8, scoped, tag = 'scoped memory for decoder_forward.1']
    #allocation4 [shape = 'u8[4096]{0}', space=vmem, size = 0x1000, scoped, tag = 'output window, operand 1, single buffered']
    #allocation5 [shape = 's32[1]{0}', space=sflag, size = 0x4, scoped, tag = 'scoped memory for decoder_forward.1']
    #allocation6 [shape = 'u8[4096]{0}', space=vmem, size = 0x1000, scoped, tag = 'output window, operand 2, single buffered']
    %16 = vsyncpa [#allocation3], 0
    %s17 = scalar_lea.sflag [#allocation3], 1
    %18 = vsyncpa %s17, 0
    %19 = vsyncpa [#allocation5], 0
    loop: start=0, step=1, limit=10
    $region2: #{decoder_forward.1} parent=1 // loop_pre_header
      _
    $region3: #{decoder_forward.1} parent=1 // loop_header
      %s21 = sphi 0, %s25
      %p22 = scmp.ge.s32.totalorder %s21, 10
      %s31 = sphi 0, %s33
      %s34 = sphi 0, %s31
      %s35 = sphi 0, %s34
      %s51 = sphi 0, %s35
      %s55 = sphi 0, %s55
      %s57 = sphi 0, %s55
      %s58 = sphi 0, %s57
      %s72 = sphi 0, %s58
      %s76 = sphi 0, %s76
      %s78 = sphi 0, %s76
      %s79 = sphi 0, %s78
      %s93 = sphi 0, %s79
      %s97 = sphi 0, %s97
      %s99 = sphi 0, %s97
      %s100 = sphi 0, %s99
      %s114 = sphi 0, %s100
      %s118 = sphi 0, %s118
      %s120 = sphi 0, %s118
      %s121 = sphi 0, %s120
      %s135 = sphi 0, %s121
      %s139 = sphi 0, %s139
      %s141 = sphi 0, %s139
      %s142 = sphi 0, %s141
      %s156 = sphi 0, %s142
      %s160 = sphi 0, %s160
      %s162 = sphi 0, %s160
      %s163 = sphi 0, %s162
      %s177 = sphi 0, %s163
      %s181 = sphi 0, %s181
      %s183 = sphi 0, %s181
      %s184 = sphi 0, %s183
      %s198 = sphi 0, %s184
      %s204 = sphi 0, %s206
      %s207 = sphi 0, %s204
      %s208 = sphi 0, %s207
      %s224 = sphi 0, %s208
      %s228 = sphi 0, %s228
      %s230 = sphi 0, %s228
      %s231 = sphi 0, %s230
      %s245 = sphi 0, %s231
      %s249 = sphi 0, %s249
      %s251 = sphi 0, %s249
      %s252 = sphi 0, %s251
      %s266 = sphi 0, %s252
    $region4: #{decoder_forward.1} parent=1 // loop_header_branch
      %24 = sbr.rel (%p22) target = $region8
    $region5: #{decoder_forward.1} parent=1 // loop_body
      %s26 = ssub.s32 %s21, 1
      %s27 = ssub.s32 %s21, 2
      %s28 = sadd.s32 %s21, 1
      %s29 = ssub.s32 %s21, %s28
      %p30 = scmp.eq.s32.totalorder %s29, 0
      %s32 = sadd.s32 %s31, 1
      %s33 = scalar_select %p30, %s31, %s32
      %p36 = pneg %p30
      %p37 = scmp.eq.s32.totalorder %s21, 7
      %p38 = por %p36, %p37
      %p39 = scmp.ne.s32.totalorder %s31, %s34
      %p40 = scmp.eq.s32.totalorder %s21, 0
      %p41 = por %p39, %p40
      %p42 = scmp.ne.s32.totalorder %s31, %s34
      %p43 = scmp.eq.s32.totalorder %s26, 7
      %p44 = por %p42, %p43
      %p45 = scmp.ne.s32.totalorder %s34, %s35
      %p46 = scmp.eq.s32.totalorder %s26, 0
      %p47 = por %p45, %p46
      %p48 = scmp.ne.s32.totalorder %s34, %s35
      %p49 = scmp.eq.s32.totalorder %s27, 7
      %p50 = por %p48, %p49
      %p52 = scmp.ne.s32.totalorder %s35, %s51
      %p53 = scmp.eq.s32.totalorder %s27, 0
      %p54 = por %p52, %p53
      %s56 = sadd.s32 %s55, 1
      %p59 = scmp.eq.s32.totalorder %s21, 7
      %p60 = scmp.ne.s32.totalorder %s55, %s57
      %p61 = scmp.eq.s32.totalorder %s21, 0
      %p62 = por %p60, %p61
      %p63 = scmp.ne.s32.totalorder %s55, %s57
      %p64 = scmp.eq.s32.totalorder %s26, 7
      %p65 = por %p63, %p64
      %p66 = scmp.ne.s32.totalorder %s57, %s58
      %p67 = scmp.eq.s32.totalorder %s26, 0
      %p68 = por %p66, %p67
      %p69 = scmp.ne.s32.totalorder %s57, %s58
      %p70 = scmp.eq.s32.totalorder %s27, 7
      %p71 = por %p69, %p70
      %p73 = scmp.ne.s32.totalorder %s58, %s72
      %p74 = scmp.eq.s32.totalorder %s27, 0
      %p75 = por %p73, %p74
      %s77 = sadd.s32 %s76, 1
      %p80 = scmp.eq.s32.totalorder %s21, 7
      %p81 = scmp.ne.s32.totalorder %s76, %s78
      %p82 = scmp.eq.s32.totalorder %s21, 0
      %p83 = por %p81, %p82
      %p84 = scmp.ne.s32.totalorder %s76, %s78
      %p85 = scmp.eq.s32.totalorder %s26, 7
      %p86 = por %p84, %p85
      %p87 = scmp.ne.s32.totalorder %s78, %s79
      %p88 = scmp.eq.s32.totalorder %s26, 0
      %p89 = por %p87, %p88
      %p90 = scmp.ne.s32.totalorder %s78, %s79
      %p91 = scmp.eq.s32.totalorder %s27, 7
      %p92 = por %p90, %p91
      %p94 = scmp.ne.s32.totalorder %s79, %s93
      %p95 = scmp.eq.s32.totalorder %s27, 0
      %p96 = por %p94, %p95
      %s98 = sadd.s32 %s97, 1
      %p101 = scmp.eq.s32.totalorder %s21, 7
      %p102 = scmp.ne.s32.totalorder %s97, %s99
      %p103 = scmp.eq.s32.totalorder %s21, 0
      %p104 = por %p102, %p103
      %p105 = scmp.ne.s32.totalorder %s97, %s99
      %p106 = scmp.eq.s32.totalorder %s26, 7
      %p107 = por %p105, %p106
      %p108 = scmp.ne.s32.totalorder %s99, %s100
      %p109 = scmp.eq.s32.totalorder %s26, 0
      %p110 = por %p108, %p109
      %p111 = scmp.ne.s32.totalorder %s99, %s100
      %p112 = scmp.eq.s32.totalorder %s27, 7
      %p113 = por %p111, %p112
      %p115 = scmp.ne.s32.totalorder %s100, %s114
      %p116 = scmp.eq.s32.totalorder %s27, 0
      %p117 = por %p115, %p116
      %s119 = sadd.s32 %s118, 1
      %p122 = scmp.eq.s32.totalorder %s21, 7
      %p123 = scmp.ne.s32.totalorder %s118, %s120
      %p124 = scmp.eq.s32.totalorder %s21, 0
      %p125 = por %p123, %p124
      %p126 = scmp.ne.s32.totalorder %s118, %s120
      %p127 = scmp.eq.s32.totalorder %s26, 7
      %p128 = por %p126, %p127
      %p129 = scmp.ne.s32.totalorder %s120, %s121
      %p130 = scmp.eq.s32.totalorder %s26, 0
      %p131 = por %p129, %p130
      %p132 = scmp.ne.s32.totalorder %s120, %s121
      %p133 = scmp.eq.s32.totalorder %s27, 7
      %p134 = por %p132, %p133
      %p136 = scmp.ne.s32.totalorder %s121, %s135
      %p137 = scmp.eq.s32.totalorder %s27, 0
      %p138 = por %p136, %p137
      %s140 = sadd.s32 %s139, 1
      %p143 = scmp.eq.s32.totalorder %s21, 7
      %p144 = scmp.ne.s32.totalorder %s139, %s141
      %p145 = scmp.eq.s32.totalorder %s21, 0
      %p146 = por %p144, %p145
      %p147 = scmp.ne.s32.totalorder %s139, %s141
      %p148 = scmp.eq.s32.totalorder %s26, 7
      %p149 = por %p147, %p148
      %p150 = scmp.ne.s32.totalorder %s141, %s142
      %p151 = scmp.eq.s32.totalorder %s26, 0
      %p152 = por %p150, %p151
      %p153 = scmp.ne.s32.totalorder %s141, %s142
      %p154 = scmp.eq.s32.totalorder %s27, 7
      %p155 = por %p153, %p154
      %p157 = scmp.ne.s32.totalorder %s142, %s156
      %p158 = scmp.eq.s32.totalorder %s27, 0
      %p159 = por %p157, %p158
      %s161 = sadd.s32 %s160, 1
      %p164 = scmp.eq.s32.totalorder %s21, 7
      %p165 = scmp.ne.s32.totalorder %s160, %s162
      %p166 = scmp.eq.s32.totalorder %s21, 0
      %p167 = por %p165, %p166
      %p168 = scmp.ne.s32.totalorder %s160, %s162
      %p169 = scmp.eq.s32.totalorder %s26, 7
      %p170 = por %p168, %p169
      %p171 = scmp.ne.s32.totalorder %s162, %s163
      %p172 = scmp.eq.s32.totalorder %s26, 0
      %p173 = por %p171, %p172
      %p174 = scmp.ne.s32.totalorder %s162, %s163
      %p175 = scmp.eq.s32.totalorder %s27, 7
      %p176 = por %p174, %p175
      %p178 = scmp.ne.s32.totalorder %s163, %s177
      %p179 = scmp.eq.s32.totalorder %s27, 0
      %p180 = por %p178, %p179
      %s182 = sadd.s32 %s181, 1
      %p185 = scmp.eq.s32.totalorder %s21, 7
      %p186 = scmp.ne.s32.totalorder %s181, %s183
      %p187 = scmp.eq.s32.totalorder %s21, 0
      %p188 = por %p186, %p187
      %p189 = scmp.ne.s32.totalorder %s181, %s183
      %p190 = scmp.eq.s32.totalorder %s26, 7
      %p191 = por %p189, %p190
      %p192 = scmp.ne.s32.totalorder %s183, %s184
      %p193 = scmp.eq.s32.totalorder %s26, 0
      %p194 = por %p192, %p193
      %p195 = scmp.ne.s32.totalorder %s183, %s184
      %p196 = scmp.eq.s32.totalorder %s27, 7
      %p197 = por %p195, %p196
      %p199 = scmp.ne.s32.totalorder %s184, %s198
      %p200 = scmp.eq.s32.totalorder %s27, 0
      %p201 = por %p199, %p200
      %s202 = ssub.s32 %s21, %s28
      %p203 = scmp.eq.s32.totalorder %s202, 0
      %s205 = sadd.s32 %s204, 1
      %s206 = scalar_select %p203, %s204, %s205
      %p209 = pneg %p203
      %p210 = scmp.eq.s32.totalorder %s21, 7
      %p211 = por %p209, %p210
      %p212 = scmp.ne.s32.totalorder %s204, %s207
      %p213 = scmp.eq.s32.totalorder %s21, 0
      %p214 = por %p212, %p213
      %p215 = scmp.ne.s32.totalorder %s204, %s207
      %p216 = scmp.eq.s32.totalorder %s26, 7
      %p217 = por %p215, %p216
      %p218 = scmp.ne.s32.totalorder %s207, %s208
      %p219 = scmp.eq.s32.totalorder %s26, 0
      %p220 = por %p218, %p219
      %p221 = scmp.ne.s32.totalorder %s207, %s208
      %p222 = scmp.eq.s32.totalorder %s27, 7
      %p223 = por %p221, %p222
      %p225 = scmp.ne.s32.totalorder %s208, %s224
      %p226 = scmp.eq.s32.totalorder %s27, 0
      %p227 = por %p225, %p226
      %s229 = sadd.s32 %s228, 1
      %p232 = scmp.eq.s32.totalorder %s21, 7
      %p233 = scmp.ne.s32.totalorder %s228, %s230
      %p234 = scmp.eq.s32.totalorder %s21, 0
      %p235 = por %p233, %p234
      %p236 = scmp.ne.s32.totalorder %s228, %s230
      %p237 = scmp.eq.s32.totalorder %s26, 7
      %p238 = por %p236, %p237
      %p239 = scmp.ne.s32.totalorder %s230, %s231
      %p240 = scmp.eq.s32.totalorder %s26, 0
      %p241 = por %p239, %p240
      %p242 = scmp.ne.s32.totalorder %s230, %s231
      %p243 = scmp.eq.s32.totalorder %s27, 7
      %p244 = por %p242, %p243
      %p246 = scmp.ne.s32.totalorder %s231, %s245
      %p247 = scmp.eq.s32.totalorder %s27, 0
      %p248 = por %p246, %p247
      %s250 = sadd.s32 %s249, 1
      %p253 = scmp.eq.s32.totalorder %s21, 7
      %p254 = scmp.ne.s32.totalorder %s249, %s251
      %p255 = scmp.eq.s32.totalorder %s21, 0
      %p256 = por %p254, %p255
      %p257 = scmp.ne.s32.totalorder %s249, %s251
      %p258 = scmp.eq.s32.totalorder %s26, 7
      %p259 = por %p257, %p258
      %p260 = scmp.ne.s32.totalorder %s251, %s252
      %p261 = scmp.eq.s32.totalorder %s26, 0
      %p262 = por %p260, %p261
      %p263 = scmp.ne.s32.totalorder %s251, %s252
      %p264 = scmp.eq.s32.totalorder %s27, 7
      %p265 = por %p263, %p264
      %p267 = scmp.ne.s32.totalorder %s252, %s266
      %p268 = scmp.eq.s32.totalorder %s27, 0
      %p269 = por %p267, %p268
      %p270 = scmp.le.s32.totalorder 1, %s21
      %p271 = scmp.lt.s32.totalorder %s21, 9
      %p272 = pnand %p270, %p271
      %p273 = pneg %p272
      // Predicated region
      $region9: #{decoder_forward.1} parent=5 // pred_check
        _
      $region10: #{decoder_forward.1} parent=5 // pred_check_branch
        %275 = sbr.rel (%p272) target = $region12
      $region11: #{decoder_forward.1} parent=5 // pred_region
        %s276 = ssub.s32 %s21, 1
        // Predicated region
        $region13: #{decoder_forward.1} parent=11 // pred_check
          %p277 = pneg %p68
        $region14: #{decoder_forward.1} parent=11 // pred_check_branch
          %279 = sbr.rel (%p277) target = $region16
        $region15: #{decoder_forward.1} parent=11 // pred_region
          _
        $region16: #{decoder_forward.1} parent=11 // pred_fallthru
          _
        // Predicated region
        $region17: #{decoder_forward.1} parent=11 // pred_check
          %p280 = pneg %p89
        $region18: #{decoder_forward.1} parent=11 // pred_check_branch
          %282 = sbr.rel (%p280) target = $region20
        $region19: #{decoder_forward.1} parent=11 // pred_region
          _
        $region20: #{decoder_forward.1} parent=11 // pred_fallthru
          _
        // Predicated region
        $region21: #{decoder_forward.1} parent=11 // pred_check
          %p283 = pneg %p110
        $region22: #{decoder_forward.1} parent=11 // pred_check_branch
          %285 = sbr.rel (%p283) target = $region24
        $region23: #{decoder_forward.1} parent=11 // pred_region
          _
        $region24: #{decoder_forward.1} parent=11 // pred_fallthru
          _
        // Predicated region
        $region25: #{decoder_forward.1} parent=11 // pred_check
          %p286 = pneg %p131
        $region26: #{decoder_forward.1} parent=11 // pred_check_branch
          %288 = sbr.rel (%p286) target = $region28
        $region27: #{decoder_forward.1} parent=11 // pred_region
          _
        $region28: #{decoder_forward.1} parent=11 // pred_fallthru
          _
        // Predicated region
        $region29: #{decoder_forward.1} parent=11 // pred_check
          %p289 = pneg %p152
        $region30: #{decoder_forward.1} parent=11 // pred_check_branch
          %291 = sbr.rel (%p289) target = $region32
        $region31: #{decoder_forward.1} parent=11 // pred_region
          _
        $region32: #{decoder_forward.1} parent=11 // pred_fallthru
          _
        // Predicated region
        $region33: #{decoder_forward.1} parent=11 // pred_check
          %p292 = pneg %p173
        $region34: #{decoder_forward.1} parent=11 // pred_check_branch
          %294 = sbr.rel (%p292) target = $region36
        $region35: #{decoder_forward.1} parent=11 // pred_region
          _
        $region36: #{decoder_forward.1} parent=11 // pred_fallthru
          _
        // Predicated region
        $region37: #{decoder_forward.1} parent=11 // pred_check
          %p295 = pneg %p194
        $region38: #{decoder_forward.1} parent=11 // pred_check_branch
          %297 = sbr.rel (%p295) target = $region40
        $region39: #{decoder_forward.1} parent=11 // pred_region
          _
        $region40: #{decoder_forward.1} parent=11 // pred_fallthru
          _
      $region12: #{decoder_forward.1} parent=5 // pred_fallthru
        _
      %p298 = scmp.lt.s32.totalorder %s21, 8
      // Predicated region
      $region41: #{decoder_forward.1} parent=5 // pred_check
        %p299 = pneg %p298
      $region42: #{decoder_forward.1} parent=5 // pred_check_branch
        %301 = sbr.rel (%p299) target = $region44
      $region43: #{decoder_forward.1} parent=5 // pred_region
        // Predicated region
        $region45: #{decoder_forward.1} parent=43 // pred_check
          %p302 = pneg %p41
        $region46: #{decoder_forward.1} parent=43 // pred_check_branch
          %304 = sbr.rel (%p302) target = $region48
        $region47: #{decoder_forward.1} parent=43 // pred_region
          %p305 = scmp.lt.s32.totalorder %s21, 7
          %s306 = scalar_select %p305, %s21, 7
          %s307 = smul.addr %s306, 4
          %s308 = scalar_lea.vmem %s0, %s307
        $region48: #{decoder_forward.1} parent=43 // pred_fallthru
          _
      $region44: #{decoder_forward.1} parent=5 // pred_fallthru
        _
      %p309 = scmp.le.s32.totalorder 1, %s21
      %p310 = scmp.lt.s32.totalorder %s21, 9
      %p311 = pnand %p309, %p310
      %p312 = pneg %p311
      // Predicated region
      $region49: #{decoder_forward.1} parent=5 // pred_check
        _
      $region50: #{decoder_forward.1} parent=5 // pred_check_branch
        %314 = sbr.rel (%p311) target = $region52
      $region51: #{decoder_forward.1} parent=5 // pred_region
        %s315 = ssub.s32 %s21, 1
        %p316 = scmp.lt.s32.totalorder %s26, 7
        %s317 = scalar_select %p316, %s26, 7
        %s318 = smul.addr %s317, 4
        %s319 = scalar_lea.vmem %s0, %s318
        %p320 = pneg %p47
        %p321 = pneg %p44
        %p322 = pneg %p68
        %p323 = pneg %p65
        %p324 = pneg %p89
        %p325 = pneg %p86
        %p326 = pneg %p110
        %p327 = pneg %p107
        %p328 = pneg %p131
        %p329 = pneg %p128
        %p330 = pneg %p152
        %p331 = pneg %p149
        %p332 = pneg %p173
        %p333 = pneg %p170
        %p334 = pneg %p194
        %p335 = pneg %p191
        %p336 = pneg %p220
        %p337 = pneg %p217
        %s338 = sand.u32 %s207, 1
        %s339 = scalar_lea.sflag [#allocation3], %s338
        %s340 = sand.u32 %s207, 1
        %s341 = smul.addr %s340, 4
        %s342 = scalar_lea.vmem [#allocation2], %s341
        %p343 = pneg %p241
        %p344 = pneg %p238
        %p345 = pneg %p262
        %p346 = pneg %p259
        %p347 = scmp.lt.s32.totalorder %s26, 7
        %s348 = scalar_select %p347, %s26, 7
        %s349 = smul.addr %s348, 4
        %s350 = scalar_lea.vmem %s0, %s349
        %p351 = scmp.eq.s32.totalorder %s26, 0
        // Predicated region
        $region53: #{decoder_forward.1} parent=51 // pred_check
          %p352 = pneg %p351
        $region54: #{decoder_forward.1} parent=51 // pred_check_branch
          %354 = sbr.rel (%p352) target = $region56
        $region55: #{decoder_forward.1} parent=51 // pred_region
          %v355 = vld [vmem:[%s1] sm:$0xf]
          %v356 = vld [vmem:[%s1 + $0x4] sm:$0xf]
          %vm357 = vcmask 257024
          %358 = vst.msk [vmem:[#allocation4] sm:$0xf] %vm357, %v355
          %359 = vst.msk [vmem:[#allocation4 + $0x4] sm:$0xf] %vm357, %v356
          %v360 = vld [vmem:[%s2] sm:$0xf]
          %v361 = vld [vmem:[%s2 + $0x4] sm:$0xf]
          %362 = vst.msk [vmem:[#allocation6] sm:$0xf] %vm357, %v360
          %363 = vst.msk [vmem:[#allocation6 + $0x4] sm:$0xf] %vm357, %v361
        $region56: #{decoder_forward.1} parent=51 // pred_fallthru
          _
        %v364 = vld [vmem:[%s350] sm:$0xf]
        %v365 = vlaneseq
        %v366 = vand.u32 %v365, 127
        %367 = vset.pattern.permute.xlu0 0
        %368 = vperm.xlu0 %367, %v364
        %v369 = vpop.permute.xlu0 %368
        %vm370 = vcmp.eq.s32.totalorder %v366, %v369
        %v371 = vsel %vm370, 1, 0
        %v372 = vcvt.s32.f32 %v371
        %v373 = vld [vmem:[%s3] sm:$0xff]
        %v374 = vld [vmem:[%s3 + $0x8] sm:$0xff]
        %v375 = vld [vmem:[%s3 + $0x10] sm:$0xff]
        %v376 = vld [vmem:[%s3 + $0x18] sm:$0xff]
        %v377 = vld [vmem:[%s3 + $0x20] sm:$0xff]
        %v378 = vld [vmem:[%s3 + $0x28] sm:$0xff]
        %v379 = vld [vmem:[%s3 + $0x30] sm:$0xff]
        %v380 = vld [vmem:[%s3 + $0x38] sm:$0xff]
        %v381 = vld [vmem:[%s3 + $0x40] sm:$0xff]
        %v382 = vld [vmem:[%s3 + $0x48] sm:$0xff]
        %v383 = vld [vmem:[%s3 + $0x50] sm:$0xff]
        %v384 = vld [vmem:[%s3 + $0x58] sm:$0xff]
        %v385 = vld [vmem:[%s3 + $0x60] sm:$0xff]
        %v386 = vld [vmem:[%s3 + $0x68] sm:$0xff]
        %v387 = vld [vmem:[%s3 + $0x70] sm:$0xff]
        %v388 = vld [vmem:[%s3 + $0x78] sm:$0xff]
        %389 = vmatpush.msra.mxu0 %v388
        %390 = vmatpush.msra.mxu0 %v387
        %391 = vmatpush.msra.mxu0 %v386
        %392 = vmatpush.msra.mxu0 %v385
        %393 = vmatpush.msra.mxu0 %v384
        %394 = vmatpush.msra.mxu0 %v383
        %395 = vmatpush.msra.mxu0 %v382
        %396 = vmatpush.msra.mxu0 %v381
        %397 = vmatpush.msra.mxu0 %v380
        %398 = vmatpush.msra.mxu0 %v379
        %399 = vmatpush.msra.mxu0 %v378
        %400 = vmatpush.msra.mxu0 %v377
        %401 = vmatpush.msra.mxu0 %v376
        %402 = vmatpush.msra.mxu0 %v375
        %403 = vmatpush.msra.mxu0 %v374
        %404 = vmatpush.msra.mxu0 %v373
        %405 = vmatmul.f32.gmra.mxu0 %v372
        %v406 = vpop.f32.mrf.mxu0
        %v407 = vadd.f32 0.0, %v406
        %408 = vdwg.mxu0
        %v409 = vld [vmem:[#allocation4] sm:$0xf]
        %v410 = vld [vmem:[#allocation6] sm:$0xf]
        %412 = vrot.lane.b32.xlu0 %v409, 32
        %v413 = vpop.permute.xlu0 %412
        %vm415 = vcmask 261120
        %v416 = vsel %vm415, %v407, %v413
        %v417 = vld [vmem:[%s4] sm:$0xff]
        %v418 = vld [vmem:[%s4 + $0x8] sm:$0xff]
        %v419 = vld [vmem:[%s4 + $0x10] sm:$0xff]
        %v420 = vld [vmem:[%s4 + $0x18] sm:$0xff]
        %v421 = vld [vmem:[%s4 + $0x20] sm:$0xff]
        %v422 = vld [vmem:[%s4 + $0x28] sm:$0xff]
        %v423 = vld [vmem:[%s4 + $0x30] sm:$0xff]
        %v424 = vld [vmem:[%s4 + $0x38] sm:$0xff]
        %v425 = vld [vmem:[%s5] sm:$0x1]
        %v427 = vperm.slane %v425, 0
        %vm429 = vcmask 523264
        %v431 = vsel %vm429, %v416, 0
        %433 = vmatpush.msra.mxu0 0.0
        %434 = vmatpush.msra.mxu0 0.0
        %435 = vmatpush.msra.mxu0 0.0
        %436 = vmatpush.msra.mxu0 0.0
        %437 = vmatpush.msra.mxu0 0.0
        %438 = vmatpush.msra.mxu0 0.0
        %439 = vmatpush.msra.mxu0 0.0
        %440 = vmatpush.msra.mxu0 0.0
        %441 = vmatpush.msra.mxu0 %v424
        %442 = vmatpush.msra.mxu0 %v423
        %443 = vmatpush.msra.mxu0 %v422
        %444 = vmatpush.msra.mxu0 %v421
        %445 = vmatpush.msra.mxu0 %v420
        %446 = vmatpush.msra.mxu0 %v419
        %447 = vmatpush.msra.mxu0 %v418
        %448 = vmatpush.msra.mxu0 %v417
        %449 = vmatmul.f32.gmra.mxu0 %v431
        %v450 = vpop.f32.mrf.mxu0
        %v451 = vadd.f32 %v427, %v450
        %452 = vdwg.mxu0
        %v453 = vxor.u32 %v451, 2147483648
        %v454 = vmul.f32 %v453, 1.442695
        %v455 = vpow.pop %v454
        %v456 = vadd.f32 %v455, 1.0
        %v457 = vrcp.pop %v456
        %v458 = vmul.f32 %v456, %v457
        %v459 = vsub.f32 1.0, %v458
        %v460 = vmul.f32 %v457, %v459
        %v461 = vadd.f32 %v457, %v460
        %vm462 = vweird.f32 %v456
        %vm463 = vweird.f32 %v457
        %vm464 = vmor %vm462, %vm463
        %v465 = vsel %vm464, %v457, %v461
        %v466 = vand.u32 2147483647, %v456
        %vm467 = vcmp.eq.f32.partialorder %v466, 8.507059e+37
        %v468 = vand.u32 %v456, 2147483648
        %v469 = vor.u32 1.1754944e-38, %v468
        %v470 = vsel %vm467, %v469, %v465
        %v471 = vmul.f32 1.0, %v470
        %v472 = vtanh.pop %v451
        %474 = vrot.lane.b32.xlu0 %v410, 32
        %v475 = vpop.permute.xlu0 %474
        %v477 = vmul.f32 %v471, %v475
        %479 = vrot.lane.b32.xlu0 %v472, 32
        %v480 = vpop.permute.xlu0 %479
        %v482 = vmul.f32 %v471, %v480
        %484 = vrot.lane.b32.xlu0 %v482, 32
        %v485 = vpop.permute.xlu0 %484
        %v487 = vadd.f32 %v477, %v485
        %v488 = vtanh.pop %v487
        %490 = vrot.lane.b32.xlu0 %v488, 32
        %v491 = vpop.permute.xlu0 %490
        %v493 = vmul.f32 %v471, %v491
        %495 = vrot.lane.b32.xlu0 %v493, 64
        %v496 = vpop.permute.xlu0 %495
        %vm498 = vcmask 257024
        %499 = vst.msk [vmem:[#allocation4] sm:$0xf] %vm498, %v496
        %501 = vrot.lane.b32.xlu0 %v487, 96
        %v502 = vpop.permute.xlu0 %501
        %504 = vst.msk [vmem:[#allocation6] sm:$0xf] %vm498, %v502
        %s505 = scalar_lea.vmem [#allocation4], 4
        %v506 = vld [vmem:[%s505] sm:$0xf]
        %s507 = scalar_lea.vmem [#allocation6], 4
        %v508 = vld [vmem:[%s507] sm:$0xf]
        %510 = vrot.lane.b32.xlu0 %v506, 32
        %v511 = vpop.permute.xlu0 %510
        %v513 = vsel %vm415, %v496, %v511
        %s514 = scalar_lea.vmem %s4, 64
        %v515 = vld [vmem:[%s514] sm:$0xff]
        %v516 = vld [vmem:[%s514 + $0x8] sm:$0xff]
        %v517 = vld [vmem:[%s514 + $0x10] sm:$0xff]
        %v518 = vld [vmem:[%s514 + $0x18] sm:$0xff]
        %v519 = vld [vmem:[%s514 + $0x20] sm:$0xff]
        %v520 = vld [vmem:[%s514 + $0x28] sm:$0xff]
        %v521 = vld [vmem:[%s514 + $0x30] sm:$0xff]
        %v522 = vld [vmem:[%s514 + $0x38] sm:$0xff]
        %s523 = scalar_lea.vmem %s5, 1
        %v524 = vld [vmem:[%s523] sm:$0x1]
        %v526 = vperm.slane %v524, 0
        %v529 = vsel %vm429, %v513, 0
        %531 = vmatpush.msra.mxu0 0.0
        %532 = vmatpush.msra.mxu0 0.0
        %533 = vmatpush.msra.mxu0 0.0
        %534 = vmatpush.msra.mxu0 0.0
        %535 = vmatpush.msra.mxu0 0.0
        %536 = vmatpush.msra.mxu0 0.0
        %537 = vmatpush.msra.mxu0 0.0
        %538 = vmatpush.msra.mxu0 0.0
        %539 = vmatpush.msra.mxu0 %v522
        %540 = vmatpush.msra.mxu0 %v521
        %541 = vmatpush.msra.mxu0 %v520
        %542 = vmatpush.msra.mxu0 %v519
        %543 = vmatpush.msra.mxu0 %v518
        %544 = vmatpush.msra.mxu0 %v517
        %545 = vmatpush.msra.mxu0 %v516
        %546 = vmatpush.msra.mxu0 %v515
        %547 = vmatmul.f32.gmra.mxu0 %v529
        %v548 = vpop.f32.mrf.mxu0
        %v549 = vadd.f32 %v526, %v548
        %550 = vdwg.mxu0
        %v551 = vxor.u32 %v549, 2147483648
        %v552 = vmul.f32 %v551, 1.442695
        %v553 = vpow.pop %v552
        %v554 = vadd.f32 %v553, 1.0
        %v555 = vrcp.pop %v554
        %v556 = vmul.f32 %v554, %v555
        %v557 = vsub.f32 1.0, %v556
        %v558 = vmul.f32 %v555, %v557
        %v559 = vadd.f32 %v555, %v558
        %vm560 = vweird.f32 %v554
        %vm561 = vweird.f32 %v555
        %vm562 = vmor %vm560, %vm561
        %v563 = vsel %vm562, %v555, %v559
        %v564 = vand.u32 2147483647, %v554
        %vm565 = vcmp.eq.f32.partialorder %v564, 8.507059e+37
        %v566 = vand.u32 %v554, 2147483648
        %v567 = vor.u32 1.1754944e-38, %v566
        %v568 = vsel %vm565, %v567, %v563
        %v569 = vmul.f32 1.0, %v568
        %v570 = vtanh.pop %v549
        %572 = vrot.lane.b32.xlu0 %v508, 32
        %v573 = vpop.permute.xlu0 %572
        %v575 = vmul.f32 %v569, %v573
        %577 = vrot.lane.b32.xlu0 %v570, 32
        %v578 = vpop.permute.xlu0 %577
        %v580 = vmul.f32 %v569, %v578
        %582 = vrot.lane.b32.xlu0 %v580, 32
        %v583 = vpop.permute.xlu0 %582
        %v585 = vadd.f32 %v575, %v583
        %v586 = vtanh.pop %v585
        %588 = vrot.lane.b32.xlu0 %v586, 32
        %v589 = vpop.permute.xlu0 %588
        %v591 = vmul.f32 %v569, %v589
        %593 = vrot.lane.b32.xlu0 %v591, 64
        %v594 = vpop.permute.xlu0 %593
        %596 = vst.msk [vmem:[%s505] sm:$0xf] %vm498, %v594
        %598 = vrot.lane.b32.xlu0 %v585, 96
        %v599 = vpop.permute.xlu0 %598
        %601 = vst.msk [vmem:[%s507] sm:$0xf] %vm498, %v599
        %v602 = vld [vmem:[%s6] sm:$0xff]
        %v603 = vld [vmem:[%s6 + $0x8] sm:$0xff]
        %v604 = vld [vmem:[%s6 + $0x10] sm:$0xff]
        %v605 = vld [vmem:[%s6 + $0x18] sm:$0xff]
        %v606 = vld [vmem:[%s7] sm:$0x1]
        %v608 = vperm.slane %v606, 0
        %v610 = vsel %vm415, %v594, 0
        %612 = vmatpush.msra.mxu0 0.0
        %613 = vmatpush.msra.mxu0 0.0
        %614 = vmatpush.msra.mxu0 0.0
        %615 = vmatpush.msra.mxu0 0.0
        %616 = vmatpush.msra.mxu0 0.0
        %617 = vmatpush.msra.mxu0 0.0
        %618 = vmatpush.msra.mxu0 0.0
        %619 = vmatpush.msra.mxu0 0.0
        %620 = vmatpush.msra.mxu0 0.0
        %621 = vmatpush.msra.mxu0 0.0
        %622 = vmatpush.msra.mxu0 0.0
        %623 = vmatpush.msra.mxu0 0.0
        %624 = vmatpush.msra.mxu0 %v605
        %625 = vmatpush.msra.mxu0 %v604
        %626 = vmatpush.msra.mxu0 %v603
        %627 = vmatpush.msra.mxu0 %v602
        %628 = vmatmul.f32.gmra.mxu0 %v610
        %v629 = vpop.f32.mrf.mxu0
        %v630 = vadd.f32 %v608, %v629
        %631 = vdwg.mxu0
        %632 = vst [vmem:[%s342] sm:$0xf] %v630
        %s633 = sand.u32 %s207, 1
        %s634 = scalar_lea.sflag [#allocation3], %s633
        %s635 = sand.u32 %s207, 1
        %s636 = smul.addr %s635, 4
        %s637 = scalar_lea.vmem [#allocation2], %s636
        // Predicated region
        $region57: #{decoder_forward.1} parent=51 // pred_check
          %p638 = pneg %p217
        $region58: #{decoder_forward.1} parent=51 // pred_check_branch
          %640 = sbr.rel (%p638) target = $region60
        $region59: #{decoder_forward.1} parent=51 // pred_region
          %642 = vsyncadd %s634, 0
          %s643 = smul.addr %s26, 4
          %s644 = scalar_lea.hbm %s8, %s643
          %s646 = sshll.u32 %s637, 4
          %s647 = int_to_ptr.vmem [resolvable:$true] %s646
          %s648 = sshll.u32 %s644, 4
          %s649 = int_to_ptr.hbm [resolvable:$true] %s648
          %651 = dma.vmem_to_hbm [thread:$0]  %s647, 64, %s649, %s634
        $region60: #{decoder_forward.1} parent=51 // pred_fallthru
          _
        // Predicated region
        $region61: #{decoder_forward.1} parent=51 // pred_check
          %p652 = pneg %p238
        $region62: #{decoder_forward.1} parent=51 // pred_check_branch
          %654 = sbr.rel (%p652) target = $region64
        $region63: #{decoder_forward.1} parent=51 // pred_region
          %656 = vsyncadd [#allocation5], 0
          %s657 = sshll.u32 [#allocation4], 4
          %s658 = int_to_ptr.vmem [resolvable:$true] %s657
          %s659 = sshll.u32 %s9, 4
          %s660 = int_to_ptr.hbm [resolvable:$true] %s659
          %665 = dma.vmem_to_hbm [thread:$0]  %s658, 128, %s660, [#allocation5], 64, 64, 4
        $region64: #{decoder_forward.1} parent=51 // pred_fallthru
          _
        // Predicated region
        $region65: #{decoder_forward.1} parent=51 // pred_check
          %p666 = pneg %p259
        $region66: #{decoder_forward.1} parent=51 // pred_check_branch
          %668 = sbr.rel (%p666) target = $region68
        $region67: #{decoder_forward.1} parent=51 // pred_region
          %670 = vsyncadd [#allocation5], 0
          %s671 = sshll.u32 [#allocation6], 4
          %s672 = int_to_ptr.vmem [resolvable:$true] %s671
          %s673 = sshll.u32 %s10, 4
          %s674 = int_to_ptr.hbm [resolvable:$true] %s673
          %679 = dma.vmem_to_hbm [thread:$0]  %s672, 128, %s674, [#allocation5], 64, 64, 4
        $region68: #{decoder_forward.1} parent=51 // pred_fallthru
          _
        // Predicated region
        $region69: #{decoder_forward.1} parent=51 // pred_check
          %p680 = pneg %p238
        $region70: #{decoder_forward.1} parent=51 // pred_check_branch
          %682 = sbr.rel (%p680) target = $region72
        $region71: #{decoder_forward.1} parent=51 // pred_region
          %684 = dma.done [#allocation5], 128
        $region72: #{decoder_forward.1} parent=51 // pred_fallthru
          _
        // Predicated region
        $region73: #{decoder_forward.1} parent=51 // pred_check
          %p685 = pneg %p259
        $region74: #{decoder_forward.1} parent=51 // pred_check_branch
          %687 = sbr.rel (%p685) target = $region76
        $region75: #{decoder_forward.1} parent=51 // pred_region
          %689 = dma.done [#allocation5], 128
        $region76: #{decoder_forward.1} parent=51 // pred_fallthru
          _
      $region52: #{decoder_forward.1} parent=5 // pred_fallthru
        _
      %p690 = scmp.le.s32.totalorder 2, %s21
      // Predicated region
      $region77: #{decoder_forward.1} parent=5 // pred_check
        %p691 = pneg %p690
      $region78: #{decoder_forward.1} parent=5 // pred_check_branch
        %693 = sbr.rel (%p691) target = $region80
      $region79: #{decoder_forward.1} parent=5 // pred_region
        %s694 = ssub.s32 %s21, 2
        // Predicated region
        $region81: #{decoder_forward.1} parent=79 // pred_check
          %p695 = pneg %p223
        $region82: #{decoder_forward.1} parent=79 // pred_check_branch
          %697 = sbr.rel (%p695) target = $region84
        $region83: #{decoder_forward.1} parent=79 // pred_region
          %s698 = sand.u32 %s208, 1
          %s699 = scalar_lea.sflag [#allocation3], %s698
          %s700 = sand.u32 %s208, 1
          %s701 = smul.addr %s700, 4
          %s702 = scalar_lea.vmem [#allocation2], %s701
          %704 = dma.done %s699, 64
        $region84: #{decoder_forward.1} parent=79 // pred_fallthru
          _
      $region80: #{decoder_forward.1} parent=5 // pred_fallthru
        _
    $region6: #{decoder_forward.1} parent=1 // loop_footer
      %s25 = sadd.s32 1, %s21
    $region7: #{decoder_forward.1} parent=1 // loop_footer_branch
      %20 = sbr.rel target = $region3
    $region8: #{decoder_forward.1} parent=1 // loop_exit
      _
    %705 = vsyncpa [#allocation3], 1
    %s706 = scalar_lea.sflag [#allocation3], 1
    %707 = vsyncpa %s706, 1
    %708 = vsyncpa [#allocation5], 1

</llo_original>
